<compile_context>
chip_gen: v7x
topology: tpu7x:2x2x1
jax: 0.10.0
libtpu: 0.0.40
codegen_flags: <defaults>
</compile_context>

<pallas_src>
import functools
import math

import jax
import jax.numpy as jnp
from jax.experimental import pallas as pl
from jax.experimental.pallas import tpu as pltpu


def _round_up(x: int, m: int) -> int:
    return ((x + m - 1) // m) * m


# --------------------------------- kernels ---------------------------------

def _skip_linear_kernel(x_ref, wt_ref, b_ref, o_ref):
    """Regime A: W^T fully resident in VMEM; single grid axis over row tiles."""
    x = x_ref[...]                                         # (tm, Hp), original dtype
    y = jnp.dot(x.astype(jnp.bfloat16), wt_ref[...],       # wt: (Hp, Hp) bf16, canonical (K, N)
                preferred_element_type=jnp.float32)
    y = y + b_ref[...]                                     # bias already f32
    o_ref[...] = (x.astype(jnp.float32) + y).astype(o_ref.dtype)


def _skip_linear_ntiled_kernel(x_ref, wt_ref, b_ref, o_ref):
    """Regime B (large H): grid = (row tiles, col tiles); W streams in (Hp, tn) slabs."""
    tn = o_ref.shape[-1]
    x = x_ref[...]                                         # (tm, Hp), resident across j
    y = jnp.dot(x.astype(jnp.bfloat16), wt_ref[...],       # wt slab: (Hp, tn)
                preferred_element_type=jnp.float32)
    y = y + b_ref[...]
    col0 = pl.multiple_of(pl.program_id(1) * tn, 256)
    x_res = x_ref[:, pl.ds(col0, tn)]                      # residual slice for this col tile
    o_ref[...] = (x_res.astype(jnp.float32) + y).astype(o_ref.dtype)


# --------------------------------- wrapper ---------------------------------

def _pick_tiles(rows: int, H: int):
    """Returns (Hp, tm, tn).  tn is None => regime A (fully resident W)."""
    # Lane-dense hidden dim.  (On v6e/v7x a 256-multiple Hp fills the 256x256 MXU;
    # real model widths are already 256-aligned, so we keep 128 to avoid extra padding.)
    Hp = _round_up(H, 128)
    w_bytes = 2 * Hp * Hp                      # bf16, single-buffered

    if w_bytes <= (32 << 20):                  # resident W fits v7x's 64 MiB/TC with tile room
        # Regime A: regime-aware row tile -- larger when mem-bound at small/medium H.
        if Hp <= 1024:
            tm = 1024
        elif Hp <= 2048:
            tm = 512
        else:
            tm = 256
        tm = tm if rows > tm else rows         # single full-dim block for small inputs
        return Hp, tm, None

    # Regime B: N-tile so each streamed (Hp, tn) bf16 W slab is <= ~8 MiB per buffer.
    tn = max(256, ((8 << 20) // (2 * Hp)) // 256 * 256)
    Hp = _round_up(Hp, tn)                     # exact column grid (no OOB residual slice)
    tm = 256 if rows > 256 else rows
    return Hp, tm, tn


@jax.jit
def skip_connection_linear(x, weight, bias):
    """x: (..., H); weight: (H, H) in PyTorch (out, in) layout; bias: (H,).

    Returns x + (x @ weight.T + bias) with x's shape and dtype.
    """
    orig_shape = x.shape
    H = x.shape[-1]
    rows = math.prod(x.shape[:-1])
    x2d = x.reshape(rows, H)
    itemsize = jnp.dtype(x.dtype).itemsize

    Hp, tm, tn = _pick_tiles(rows, H)

    # One-time weight transpose (out,in)->(in,out) fused with pad + bf16 cast in XLA,
    # so the MXU consumes W directly (no per-tile in-kernel re-layout).
    if Hp != H:
        wt = jnp.pad(weight.T, ((0, Hp - H), (0, Hp - H))).astype(jnp.bfloat16)
        b = jnp.pad(bias, (0, Hp - H)).astype(jnp.float32).reshape(1, Hp)
        xk = jnp.pad(x2d, ((0, 0), (0, Hp - H)))            # rows are never padded
    else:
        wt = weight.T.astype(jnp.bfloat16)
        b = bias.astype(jnp.float32).reshape(1, Hp)
        xk = x2d

    n_row_tiles = pl.cdiv(rows, tm)

    if tn is None:
        # ---------------- Regime A: resident W ----------------
        grid = (n_row_tiles,)
        in_specs = [
            pl.BlockSpec((tm, Hp), lambda i: (i, 0)),                     # x: streams
            pl.BlockSpec((Hp, Hp), lambda i: (0, 0),
                         pipeline_mode=pl.Buffered(1)),                   # W^T: resident, 1 buffer
            pl.BlockSpec((1, Hp), lambda i: (0, 0),
                         pipeline_mode=pl.Buffered(1)),                   # bias: resident, 1 buffer
        ]
        out_specs = pl.BlockSpec((tm, Hp), lambda i: (i, 0))
        kernel = _skip_linear_kernel
        semantics = ("parallel",)                                         # megacore-shardable
        vmem_need = (2 * Hp * Hp + 4 * Hp
                     + 2 * tm * Hp * itemsize                             # x (double-buffered)
                     + 2 * tm * Hp * itemsize)                            # out (double-buffered)
    else:
        # ---------------- Regime B: N-tiled W (large H) ----------------
        n_col_tiles = Hp // tn
        grid = (n_row_tiles, n_col_tiles)
        in_specs = [
            pl.BlockSpec((tm, Hp), lambda i, j: (i, 0)),                  # x row tile: resident over j
            pl.BlockSpec((Hp, tn), lambda i, j: (0, j)),                  # W^T slab: streams over j
            pl.BlockSpec((1, tn), lambda i, j: (0, j)),
        ]
        out_specs = pl.BlockSpec((tm, tn), lambda i, j: (i, j))
        kernel = _skip_linear_ntiled_kernel
        semantics = ("parallel", "parallel")
        vmem_need = (2 * 2 * Hp * tn + 2 * 4 * tn
                     + 2 * tm * Hp * itemsize
                     + 2 * tm * tn * itemsize)

    # Explicit scoped-VMEM budget (defaults: 16 MiB v5e / 32 MiB v6e+); cap well below physical.
    vmem_limit = min(max(int(vmem_need * 1.25) + (1 << 20), 32 << 20), 100 << 20)

    cost = pl.CostEstimate(
        flops=2 * rows * Hp * Hp,
        transcendentals=0,
        bytes_accessed=2 * rows * Hp * itemsize + 2 * Hp * Hp + 4 * Hp,
    )

    out = pl.pallas_call(
        kernel,
        out_shape=jax.ShapeDtypeStruct((rows, Hp), x.dtype),
        grid_spec=pl.GridSpec(grid=grid, in_specs=in_specs, out_specs=out_specs),
        compiler_params=pltpu.CompilerParams(
            dimension_semantics=semantics,
            vmem_limit_bytes=vmem_limit,
        ),
        cost_estimate=cost,
    )(xk, wt, b)

    if Hp != H:
        out = out[:, :H]
    return out.reshape(orig_shape)


if __name__ == "__main__":
    key = jax.random.PRNGKey(0)
    kx, kw, kb = jax.random.split(key, 3)

    B, S, H = 2, 8, 32
    x = jax.random.normal(kx, (B, S, H), dtype=jnp.float32)

    # Deterministic params mimicking nn.Linear(H, H) uniform(-1/sqrt(H), 1/sqrt(H)).
    bound = 1.0 / math.sqrt(H)
    weight = jax.random.uniform(kw, (H, H), minval=-bound, maxval=bound,
                                dtype=jnp.float32)   # PyTorch (out, in) layout
    bias = jax.random.uniform(kb, (H,), minval=-bound, maxval=bound,
                              dtype=jnp.float32)

    out = skip_connection_linear(x, weight, bias)
    out = jax.block_until_ready(out)

    # Reference (plain JAX, f32) -- SkipConnection semantics: x + module(x).
    # bf16 MXU operands with f32 accumulation -> loosened tolerance.
    ref = x + (jnp.einsum("bsh,oh->bso", x, weight) + bias)
    assert out.shape == x.shape and out.dtype == x.dtype
    err = float(jnp.max(jnp.abs(out - ref)))
    assert jnp.allclose(out, ref, atol=2e-2, rtol=2e-2), err

    print("KERNEL_OK")
</pallas_src>

<mosaic_0001>
module attributes {stable_mosaic.version = 11 : i64} {
  func.func @_skip_linear_kernel(%arg0: i32, %arg1: memref<16x128xf32, #tpu.memory_space<vmem>>, %arg2: memref<128x128xbf16, #tpu.memory_space<vmem>>, %arg3: memref<1x128xf32, #tpu.memory_space<vmem>>, %arg4: memref<16x128xf32, #tpu.memory_space<vmem>>) attributes {dimension_semantics = [#tpu.dimension_semantics<parallel>], iteration_bounds = array<i64: 1>, scalar_prefetch = 0 : i64, scratch_operands = 0 : i64, tpu.core_type = #tpu.core_type<tc>, window_params = [{transform_indices = @transform_0, window_bounds = array<i64: 16, 128>}, {pipeline_mode = #tpu.pipeline_mode<synchronous>, transform_indices = @transform_1, window_bounds = array<i64: 128, 128>}, {pipeline_mode = #tpu.pipeline_mode<synchronous>, transform_indices = @transform_2, window_bounds = array<i64: 1, 128>}, {transform_indices = @transform_3, window_bounds = array<i64: 16, 128>}]} {
    %c0 = arith.constant 0 : index
    %c0_0 = arith.constant 0 : index
    %0 = vector.load %arg1[%c0, %c0_0] : memref<16x128xf32, #tpu.memory_space<vmem>>, vector<16x128xf32>
    %1 = arith.truncf %0 : vector<16x128xf32> to vector<16x128xbf16>
    %c0_1 = arith.constant 0 : index
    %c0_2 = arith.constant 0 : index
    %2 = vector.load %arg2[%c0_1, %c0_2] : memref<128x128xbf16, #tpu.memory_space<vmem>>, vector<128x128xbf16>
    %cst = arith.constant dense<0.000000e+00> : vector<16x128xf32>
    %3 = tpu.matmul %1, %2, %cst {dimension_numbers = #tpu.dot_dimension_numbers<[1], [0], [0], [1], [0, 0, 1, 1], [], []>} : vector<16x128xbf16>, vector<128x128xbf16>, vector<16x128xf32> -> vector<16x128xf32>
    %c0_3 = arith.constant 0 : index
    %c0_4 = arith.constant 0 : index
    %4 = vector.load %arg3[%c0_3, %c0_4] : memref<1x128xf32, #tpu.memory_space<vmem>>, vector<1x128xf32>
    %5 = vector.broadcast %4 : vector<1x128xf32> to vector<16x128xf32>
    %6 = arith.addf %3, %5 : vector<16x128xf32>
    %7 = arith.addf %0, %6 : vector<16x128xf32>
    %c0_5 = arith.constant 0 : index
    %c0_6 = arith.constant 0 : index
    %8 = vector.load %arg4[%c0_5, %c0_6] : memref<16x128xf32, #tpu.memory_space<vmem>>, vector<16x128xf32>
    tpu.vector_store %arg4[%c0_5, %c0_6], %7 {strides = array<i32>} : memref<16x128xf32, #tpu.memory_space<vmem>>, vector<16x128xf32>,
    return
  }
  func.func @transform_0(%arg0: i32) -> (i32, i32) {
    %c0_i32 = arith.constant 0 : i32
    %c0_i32_0 = arith.constant 0 : i32
    return %arg0, %c0_i32 : i32, i32
  }
  func.func @transform_1(%arg0: i32) -> (i32, i32) {
    %c0_i32 = arith.constant 0 : i32
    %c0_i32_0 = arith.constant 0 : i32
    %c0_i32_1 = arith.constant 0 : i32
    return %c0_i32, %c0_i32_0 : i32, i32
  }
  func.func @transform_2(%arg0: i32) -> (i32, i32) {
    %c0_i32 = arith.constant 0 : i32
    %c0_i32_0 = arith.constant 0 : i32
    %c0_i32_1 = arith.constant 0 : i32
    return %c0_i32, %c0_i32_0 : i32, i32
  }
  func.func @transform_3(%arg0: i32) -> (i32, i32) {
    %c0_i32 = arith.constant 0 : i32
    %c0_i32_0 = arith.constant 0 : i32
    return %arg0, %c0_i32 : i32, i32
  }
}

</mosaic_0001>

<llo_original>
// kernel: skip_connection_linear.1
$region0: #{skip_connection_linear.1}
  #allocation0 [shape = 'u32[]', space=smem, size = 0x4, offset = 0x4, fixed_abs, tag = 'smem constant byte address 0x4 - core index']
  #allocation1 [shape = 'u32[144,128]{1,0:T(1,128)}', space=vmem, size = 0x12000, scoped, tag = 'internal scratch']
  %s0 = inlined_call_operand.vmem [shape: f32[16,128], index: 0, kind: input, shape index: {}]
  %s1 = inlined_call_operand.vmem [shape: bf16[128,128], index: 1, kind: input, shape index: {}]
  %s2 = inlined_call_operand.vmem [shape: f32[1,128], index: 2, kind: input, shape index: {}]
  %s3 = inlined_call_operand.vmem [shape: f32[16,128], index: 3, kind: output, shape index: {}]
  %s4 = sld [smem:[#allocation0]]
  $region22: #{skip_connection_linear.1} parent=0
    _
  %s6 = ssub.s32 1, %s4
  %s7 = scalar_select 0, %s6, %s4
  // Predicated region
  $region2: #{skip_connection_linear.1} parent=0 // pred_check
    _
  $region3: #{skip_connection_linear.1} parent=0 // pred_check_branch
    %9 = sbr.rel (0) target = $region5
  $region4: #{skip_connection_linear.1} parent=0 // pred_region
    _
  $region5: #{skip_connection_linear.1} parent=0 // pred_fallthru
    _
  // Predicated region
  $region6: #{skip_connection_linear.1} parent=0 // pred_check
    _
  $region7: #{skip_connection_linear.1} parent=0 // pred_check_branch
    %11 = sbr.rel (0) target = $region9
  $region8: #{skip_connection_linear.1} parent=0 // pred_region
    _
  $region9: #{skip_connection_linear.1} parent=0 // pred_fallthru
    _
  // Predicated region
  $region10: #{skip_connection_linear.1} parent=0 // pred_check
    _
  $region11: #{skip_connection_linear.1} parent=0 // pred_check_branch
    %13 = sbr.rel (0) target = $region13
  $region12: #{skip_connection_linear.1} parent=0 // pred_region
    _
  $region13: #{skip_connection_linear.1} parent=0 // pred_fallthru
    _
  %v15 = vld [vmem:[%s0] sm:$0xff]
  %v16 = vld [vmem:[%s0 + $0x8] sm:$0xff]
  %v17 = vpack.c.bf16 %v16, %v15
  %v18 = vld [vmem:[%s1] sm:$0xf]
  %v19 = vld [vmem:[%s1 + $0x4] sm:$0xf]
  %v20 = vld [vmem:[%s1 + $0x8] sm:$0xf]
  %v21 = vld [vmem:[%s1 + $0xc] sm:$0xf]
  %v22 = vld [vmem:[%s1 + $0x10] sm:$0xf]
  %v23 = vld [vmem:[%s1 + $0x14] sm:$0xf]
  %v24 = vld [vmem:[%s1 + $0x18] sm:$0xf]
  %v25 = vld [vmem:[%s1 + $0x1c] sm:$0xf]
  %v26 = vld [vmem:[%s1 + $0x20] sm:$0xf]
  %v27 = vld [vmem:[%s1 + $0x24] sm:$0xf]
  %v28 = vld [vmem:[%s1 + $0x28] sm:$0xf]
  %v29 = vld [vmem:[%s1 + $0x2c] sm:$0xf]
  %v30 = vld [vmem:[%s1 + $0x30] sm:$0xf]
  %v31 = vld [vmem:[%s1 + $0x34] sm:$0xf]
  %v32 = vld [vmem:[%s1 + $0x38] sm:$0xf]
  %v33 = vld [vmem:[%s1 + $0x3c] sm:$0xf]
  %v34 = vld [vmem:[%s2] sm:$0x1]
  %v36 = vlaneseq
  %v37 = vshrl.u32 %v36, 7
  %v38 = vsub.s32 0, %v37
  %v39 = vrot.slane %v34, %v38
  %v57 = vunpack.c.l.b16 %v18
  %v58 = vunpack.c.l.b16 %v19
  %v59 = vunpack.c.l.b16 %v20
  %v60 = vunpack.c.l.b16 %v21
  %v61 = vunpack.c.l.b16 %v22
  %v62 = vunpack.c.l.b16 %v23
  %v63 = vunpack.c.l.b16 %v24
  %v64 = vunpack.c.l.b16 %v25
  %v65 = vunpack.c.l.b16 %v26
  %v66 = vunpack.c.l.b16 %v27
  %v67 = vunpack.c.l.b16 %v28
  %v68 = vunpack.c.l.b16 %v29
  %v69 = vunpack.c.l.b16 %v30
  %v70 = vunpack.c.l.b16 %v31
  %v71 = vunpack.c.l.b16 %v32
  %v72 = vunpack.c.l.b16 %v33
  %v73 = vpack.c.b16 %v58, %v57
  %v74 = vpack.c.b16 %v60, %v59
  %v75 = vpack.c.b16 %v62, %v61
  %v76 = vpack.c.b16 %v64, %v63
  %v77 = vpack.c.b16 %v66, %v65
  %v78 = vpack.c.b16 %v68, %v67
  %v79 = vpack.c.b16 %v70, %v69
  %v80 = vpack.c.b16 %v72, %v71
  %89 = vmatprep.subr.bf16.mxu0 0
  %90 = vmatpush1.bf16.msra.mxu0 %v73
  %91 = vmatprep.subr.bf16.mxu0 0
  %92 = vmatpush1.bf16.msra.mxu0 %v74
  %93 = vmatprep.subr.bf16.mxu0 0
  %94 = vmatpush1.bf16.msra.mxu0 %v75
  %95 = vmatprep.subr.bf16.mxu0 0
  %96 = vmatpush1.bf16.msra.mxu0 %v76
  %97 = vmatprep.subr.bf16.mxu0 0
  %98 = vmatpush1.bf16.msra.mxu0 %v77
  %99 = vmatprep.subr.bf16.mxu0 0
  %100 = vmatpush1.bf16.msra.mxu0 %v78
  %101 = vmatprep.subr.bf16.mxu0 0
  %102 = vmatpush1.bf16.msra.mxu0 %v79
  %103 = vmatprep.subr.bf16.mxu0 0
  %104 = vmatpush1.bf16.msra.mxu0 %v80
  %105 = vmatprep.subr.bf16.mxu0 0
  %106 = vmatpush1.bf16.msra.mxu0 0
  %107 = vmatprep.subr.bf16.mxu0 0
  %108 = vmatpush1.bf16.msra.mxu0 0
  %109 = vmatprep.subr.bf16.mxu0 0
  %110 = vmatpush1.bf16.msra.mxu0 0
  %111 = vmatprep.subr.bf16.mxu0 0
  %112 = vmatpush1.bf16.msra.mxu0 0
  %113 = vmatprep.subr.bf16.mxu0 0
  %114 = vmatpush1.bf16.msra.mxu0 0
  %115 = vmatprep.subr.bf16.mxu0 0
  %116 = vmatpush1.bf16.msra.mxu0 0
  %117 = vmatprep.subr.bf16.mxu0 0
  %118 = vmatpush1.bf16.msra.mxu0 0
  %119 = vmatprep.subr.bf16.mxu0 0
  %120 = vmatpush1.bf16.msra.mxu0 0
  %121 = vmatprep.mubr.bf16.mxu0 0
  %122 = vmatmul.mubr.bf16.gmra.mrb[0].mxu0 %v17
  %v123 = vpop.f32.mrb[0].mxu0
  %v124 = vadd.f32 %v39, %v123
  %v125 = vpop.f32.mrb[0].mxu0
  %v126 = vpop.f32.mrb[0].mxu0
  %v127 = vadd.f32 %v39, %v126
  %v128 = vpop.f32.mrb[0].mxu0
  %129 = vdwg.mxu0
  %v130 = vadd.f32 %v15, %v124
  %v131 = vadd.f32 %v16, %v127
  %132 = vst [vmem:[%s3] sm:$0xff] %v130
  %133 = vst [vmem:[%s3 + $0x8] sm:$0xff] %v131
  // Predicated region
  $region14: #{skip_connection_linear.1} parent=0 // pred_check
    _
  $region15: #{skip_connection_linear.1} parent=0 // pred_check_branch
    %135 = sbr.rel (0) target = $region17
  $region16: #{skip_connection_linear.1} parent=0 // pred_region
    _
  $region17: #{skip_connection_linear.1} parent=0 // pred_fallthru
    _
  // Predicated region
  $region18: #{skip_connection_linear.1} parent=0 // pred_check
    _
  $region19: #{skip_connection_linear.1} parent=0 // pred_check_branch
    %137 = sbr.rel (0) target = $region21
  $region20: #{skip_connection_linear.1} parent=0 // pred_region
    _
  $region21: #{skip_connection_linear.1} parent=0 // pred_fallthru
    _

</llo_original>
